<compile_context>
chip_gen: v7x
topology: tpu7x:2x2x1
jax: 0.10.0
libtpu: 0.0.40
codegen_flags: <defaults>
</compile_context>

<pallas_src>
import jax
import jax.numpy as jnp
from jax.experimental import pallas as pl
from jax.experimental.pallas import tpu as pltpu

_EPS = 1e-5  # F.batch_norm default

_LANE = 128
_TARGET_BLOCK_BYTES = 4 * 1024 * 1024     # ~4 MiB blocks amortize per-step overhead
_MIN_SPLIT_BLOCK_BYTES = 1 * 1024 * 1024  # never split below ~1 MiB just for grid count
_MIN_GRID_BLOCKS = 8                      # keep both v7x TensorCores fed
_VMEM_LIMIT = 40 * 1024 * 1024            # in+out double-buffered ~16 MiB + headroom


def _round_up(x, m):
    return ((x + m - 1) // m) * m


def _round_down(x, m):
    return (x // m) * m


def _sublane(dtype):
    # f32 -> 8, bf16/f16 -> 16, int8/fp8 -> 32 (packed sublane tiles).
    return max(8, 32 // jnp.dtype(dtype).itemsize)


def _block_dims(n, c, hw, dtype):
    """Pick (channel_block, column_block) from a fixed byte budget."""
    itemsize = jnp.dtype(dtype).itemsize
    sub = _sublane(dtype)
    c_cap = _round_up(c, sub)        # largest useful channel block
    hw_cap = _round_up(hw, _LANE)    # largest useful column block

    budget = _TARGET_BLOCK_BYTES // itemsize          # elements per block
    min_split = _MIN_SPLIT_BLOCK_BYTES // itemsize
    total = n * c_cap * hw_cap
    if total // _MIN_GRID_BLOCKS >= min_split:
        # Big tensor: cap block size so the grid has >= _MIN_GRID_BLOCKS blocks
        # (v7x megacore + pipelining) without dropping below ~1 MiB per block.
        budget = min(budget, _round_up(total // _MIN_GRID_BLOCKS, sub * _LANE))

    # Columns first (contiguous axis -> contiguous DMA), rows fill the rest.
    bw = min(hw_cap, max(_LANE, _round_down(budget // sub, _LANE)))
    bc = min(c_cap, max(sub, _round_down(budget // bw, sub)))
    return bc, bw


def _frozen_bn_kernel(x_ref, scale_ref, shift_ref, o_ref):
    # x_ref/o_ref: (1, bc, bw); scale_ref/shift_ref: (bc, 1) -> lane broadcast.
    x = x_ref[...].astype(jnp.float32)
    y = x * scale_ref[...] + shift_ref[...]
    o_ref[...] = y.astype(o_ref.dtype)


def fold_frozen_bn_params(weight, bias, running_mean, running_var, eps=_EPS):
    """Fold frozen BN buffers into per-channel scale/shift.

    Call ONCE at model-load time (parameters are frozen); per-call path then
    contains no extra XLA ops beyond the pallas_call itself.
    Returns (scale, shift), each f32 of shape (C, 1).
    """
    inv_std = jax.lax.rsqrt(running_var.astype(jnp.float32) + eps)
    scale = weight.astype(jnp.float32) * inv_std
    shift = bias.astype(jnp.float32) - running_mean.astype(jnp.float32) * scale
    return scale.reshape(-1, 1), shift.reshape(-1, 1)


def frozen_batch_norm_2d_folded(x, scale, shift, *, donate_x=False):
    """y = x * scale + shift per channel. x: (N, C, H, W); scale/shift: (C, 1)."""
    n, c, h, w = x.shape
    hw = h * w
    x3 = x.reshape(n, c, hw)           # free view (contiguous NCHW)
    scale = scale.reshape(c, 1)
    shift = shift.reshape(c, 1)

    bc, bw = _block_dims(n, c, hw, x.dtype)
    grid = (n, pl.cdiv(c, bc), pl.cdiv(hw, bw))

    x_spec = pl.BlockSpec((1, bc, bw), lambda b, i, j: (b, i, j))
    # Param block index only depends on the channel axis; with the column axis
    # innermost the same param block is reused across column steps (no re-DMA).
    p_spec = pl.BlockSpec((bc, 1), lambda b, i, j: (i, 0))

    out = pl.pallas_call(
        _frozen_bn_kernel,
        out_shape=jax.ShapeDtypeStruct((n, c, hw), x.dtype),
        grid_spec=pltpu.PrefetchScalarGridSpec(
            num_scalar_prefetch=0,
            grid=grid,
            in_specs=[x_spec, p_spec, p_spec],
            out_specs=pl.BlockSpec((1, bc, bw), lambda b, i, j: (b, i, j)),
        ),
        compiler_params=pltpu.CompilerParams(
            dimension_semantics=("parallel", "parallel", "parallel"),
            vmem_limit_bytes=_VMEM_LIMIT,
        ),
        input_output_aliases={0: 0} if donate_x else {},
    )(x3, scale, shift)

    return out.reshape(n, c, h, w)     # free view


def frozen_batch_norm_2d(x, weight, bias, running_mean, running_var):
    """Convenience wrapper matching the PyTorch module buffers directly."""
    scale, shift = fold_frozen_bn_params(weight, bias, running_mean, running_var)
    return frozen_batch_norm_2d_folded(x, scale, shift)


if __name__ == "__main__":
    key = jax.random.PRNGKey(0)
    kx, kw, kb, km, kv = jax.random.split(key, 5)

    N, C, H, W = 2, 4, 16, 16
    x = jax.random.normal(kx, (N, C, H, W), dtype=jnp.float32)

    # Deterministic "frozen" parameters (module buffers are all shape (C,)).
    weight = 1.0 + 0.1 * jax.random.normal(kw, (C,), dtype=jnp.float32)
    bias = 0.1 * jax.random.normal(kb, (C,), dtype=jnp.float32)
    running_mean = 0.05 * jax.random.normal(km, (C,), dtype=jnp.float32)
    running_var = jnp.abs(1.0 + 0.1 * jax.random.normal(kv, (C,), dtype=jnp.float32))

    def ref_bn(xx):
        return (xx - running_mean[None, :, None, None]) / jnp.sqrt(
            running_var[None, :, None, None] + _EPS
        ) * weight[None, :, None, None] + bias[None, :, None, None]

    # Fold once (model-load time), reuse across calls.
    scale, shift = fold_frozen_bn_params(weight, bias, running_mean, running_var)

    y = jax.block_until_ready(frozen_batch_norm_2d_folded(x, scale, shift))
    assert jnp.allclose(y, ref_bn(x), atol=1e-5, rtol=1e-5), "mismatch vs reference"

    # Ragged spatial size (7x7) -> exercises masked edge blocks (no padding).
    x2 = jax.random.normal(kx, (N, C, 7, 7), dtype=jnp.float32)
    y2 = jax.block_until_ready(frozen_batch_norm_2d_folded(x2, scale, shift))
    assert jnp.allclose(y2, ref_bn(x2), atol=1e-5, rtol=1e-5), "mismatch (ragged path)"

    # bf16 activations -> exercises dtype-aware sublane rounding (16-row tiles).
    xb = x.astype(jnp.bfloat16)
    yb = jax.block_until_ready(frozen_batch_norm_2d_folded(xb, scale, shift))
    assert yb.dtype == jnp.bfloat16
    assert jnp.allclose(
        yb.astype(jnp.float32), ref_bn(xb.astype(jnp.float32)), atol=2e-2, rtol=2e-2
    ), "mismatch (bf16 path)"

    # Convenience wrapper matching the PyTorch module signature.
    y3 = jax.block_until_ready(
        frozen_batch_norm_2d(x, weight, bias, running_mean, running_var)
    )
    assert jnp.allclose(y3, ref_bn(x), atol=1e-5, rtol=1e-5), "mismatch (wrapper)"

    print("KERNEL_OK")
</pallas_src>

<mosaic_0001>
module attributes {stable_mosaic.version = 11 : i64} {
  func.func @_frozen_bn_kernel(%arg0: i32, %arg1: i32, %arg2: i32, %arg3: memref<1x8x256xf32, #tpu.memory_space<vmem>>, %arg4: memref<8x1xf32, #tpu.memory_space<vmem>>, %arg5: memref<8x1xf32, #tpu.memory_space<vmem>>, %arg6: memref<1x8x256xf32, #tpu.memory_space<vmem>>) attributes {dimension_semantics = [#tpu.dimension_semantics<parallel>, #tpu.dimension_semantics<parallel>, #tpu.dimension_semantics<parallel>], iteration_bounds = array<i64: 2, 1, 1>, scalar_prefetch = 0 : i64, scratch_operands = 0 : i64, tpu.core_type = #tpu.core_type<tc>, window_params = [{transform_indices = @transform_0, window_bounds = array<i64: 1, 8, 256>}, {transform_indices = @transform_1, window_bounds = array<i64: 8, 1>}, {transform_indices = @transform_2, window_bounds = array<i64: 8, 1>}, {transform_indices = @transform_3, window_bounds = array<i64: 1, 8, 256>}]} {
    %c0 = arith.constant 0 : index
    %c0_0 = arith.constant 0 : index
    %c0_1 = arith.constant 0 : index
    %0 = vector.load %arg3[%c0, %c0_0, %c0_1] : memref<1x8x256xf32, #tpu.memory_space<vmem>>, vector<1x8x256xf32>
    %c0_2 = arith.constant 0 : index
    %c0_3 = arith.constant 0 : index
    %1 = vector.load %arg4[%c0_2, %c0_3] : memref<8x1xf32, #tpu.memory_space<vmem>>, vector<8x1xf32>
    %2 = vector.shape_cast %1 : vector<8x1xf32> to vector<1x8x1xf32>
    %3 = vector.broadcast %2 : vector<1x8x1xf32> to vector<1x8x256xf32>
    %4 = arith.mulf %0, %3 : vector<1x8x256xf32>
    %c0_4 = arith.constant 0 : index
    %c0_5 = arith.constant 0 : index
    %5 = vector.load %arg5[%c0_4, %c0_5] : memref<8x1xf32, #tpu.memory_space<vmem>>, vector<8x1xf32>
    %6 = vector.shape_cast %5 : vector<8x1xf32> to vector<1x8x1xf32>
    %7 = vector.broadcast %6 : vector<1x8x1xf32> to vector<1x8x256xf32>
    %8 = arith.addf %4, %7 : vector<1x8x256xf32>
    %c0_6 = arith.constant 0 : index
    %c0_7 = arith.constant 0 : index
    %c0_8 = arith.constant 0 : index
    %9 = vector.load %arg6[%c0_6, %c0_7, %c0_8] : memref<1x8x256xf32, #tpu.memory_space<vmem>>, vector<1x8x256xf32>
    tpu.vector_store %arg6[%c0_6, %c0_7, %c0_8], %8 {strides = array<i32>} : memref<1x8x256xf32, #tpu.memory_space<vmem>>, vector<1x8x256xf32>,
    return
  }
  func.func @transform_0(%arg0: i32, %arg1: i32, %arg2: i32) -> (i32, i32, i32) {
    %c0_i32 = arith.constant 0 : i32
    return %arg0, %arg1, %arg2 : i32, i32, i32
  }
  func.func @transform_1(%arg0: i32, %arg1: i32, %arg2: i32) -> (i32, i32) {
    %c0_i32 = arith.constant 0 : i32
    %c0_i32_0 = arith.constant 0 : i32
    return %arg1, %c0_i32 : i32, i32
  }
  func.func @transform_2(%arg0: i32, %arg1: i32, %arg2: i32) -> (i32, i32) {
    %c0_i32 = arith.constant 0 : i32
    %c0_i32_0 = arith.constant 0 : i32
    return %arg1, %c0_i32 : i32, i32
  }
  func.func @transform_3(%arg0: i32, %arg1: i32, %arg2: i32) -> (i32, i32, i32) {
    %c0_i32 = arith.constant 0 : i32
    return %arg0, %arg1, %arg2 : i32, i32, i32
  }
}

</mosaic_0001>

<llo_original>
// kernel: tpu_custom_call.1
$region0: #{tpu_custom_call.1}
  #allocation0 [shape = 'u32[]', space=smem, size = 0x4, offset = 0x4, fixed_abs, tag = 'smem constant byte address 0x4 - core index']
  #allocation1 [shape = 'u32[144,128]{1,0:T(1,128)}', space=vmem, size = 0x12000, scoped, tag = 'internal scratch']
  %s0 = inlined_call_operand.hbm [shape: f32[2,4,256], index: 0, kind: input, shape index: {}]
  %s1 = inlined_call_operand.vmem [shape: f32[4,1], index: 1, kind: input, shape index: {}]
  %s2 = inlined_call_operand.vmem [shape: f32[4,1], index: 2, kind: input, shape index: {}]
  %s3 = inlined_call_operand.hbm [shape: f32[2,4,256], index: 3, kind: output, shape index: {}]
  %s4 = sld [smem:[#allocation0]]
  $region49: #{tpu_custom_call.1} parent=0
    _
  %s6 = ssub.s32 1, %s4
  %s7 = scalar_select 0, %s6, %s4
  $region1: #{tpu_custom_call.1} parent=0
    #allocation2 [shape = 'u8[16384]{0}', space=vmem, size = 0x4000, scoped, tag = 'input window, operand 0']
    #allocation3 [shape = 's32[2]{0}', space=sflag, size = 0x8, scoped, tag = 'scoped memory for tpu_custom_call.1']
    #allocation4 [shape = 's32[2]{0}', space=sflag, size = 0x8, scoped, tag = 'scoped memory for tpu_custom_call.1']
    #allocation5 [shape = 'u8[16384]{0}', space=vmem, size = 0x4000, scoped, tag = 'output window, operand 0']
    %8 = vsyncpa [#allocation3], 0
    %s9 = scalar_lea.sflag [#allocation3], 1
    %10 = vsyncpa %s9, 0
    %11 = vsyncpa [#allocation4], 0
    %s12 = scalar_lea.sflag [#allocation4], 1
    %13 = vsyncpa %s12, 0
    loop: start=0, step=1, limit=4
    $region2: #{tpu_custom_call.1} parent=1 // loop_pre_header
      _
    $region3: #{tpu_custom_call.1} parent=1 // loop_header
      %s15 = sphi 0, %s19
      %p16 = scmp.ge.s32.totalorder %s15, 4
      %s22 = sphi 0, %s41
      %s23 = sphi 0, %s37
      %s24 = sphi 0, %s33
      %s25 = sphi 0, %s22
      %s26 = sphi 0, %s23
      %s27 = sphi 0, %s24
      %s28 = sphi 0, %s25
      %s29 = sphi 0, %s26
      %s30 = sphi 0, %s27
      %s48 = sphi 0, %s50
      %s51 = sphi 0, %s48
      %s52 = sphi 0, %s51
      %s68 = sphi 0, %s52
      %s74 = sphi 0, %s76
      %s77 = sphi 0, %s74
      %s78 = sphi 0, %s77
      %s94 = sphi 0, %s78
      %s100 = sphi 0, %s102
      %s103 = sphi 0, %s100
      %s104 = sphi 0, %s103
      %s120 = sphi 0, %s104
      %s130 = sphi 0, %s132
      %s133 = sphi 0, %s130
      %s134 = sphi 0, %s133
      %s150 = sphi 0, %s134
    $region4: #{tpu_custom_call.1} parent=1 // loop_header_branch
      %18 = sbr.rel (%p16) target = $region8
    $region5: #{tpu_custom_call.1} parent=1 // loop_body
      %s20 = ssub.s32 %s15, 1
      %s21 = ssub.s32 %s15, 2
      %s31 = sadd.s32 1, %s24
      %p32 = scmp.ge.s32.totalorder %s31, 1
      %s33 = scalar_select %p32, 0, %s31
      %s34 = sadd.s32 1, %s23
      %s35 = scalar_select %p32, %s34, %s23
      %p36 = scmp.ge.s32.totalorder %s35, 1
      %s37 = scalar_select %p36, 0, %s35
      %s38 = sadd.s32 1, %s22
      %s39 = scalar_select %p36, %s38, %s22
      %p40 = scmp.ge.s32.totalorder %s39, 2
      %s41 = scalar_select %p40, 0, %s39
      %s42 = ssub.s32 %s22, %s41
      %s43 = ssub.s32 %s23, %s37
      %s44 = sor.u32 %s42, %s43
      %s45 = ssub.s32 %s24, %s33
      %s46 = sor.u32 %s44, %s45
      %p47 = scmp.eq.s32.totalorder %s46, 0
      %s49 = sadd.s32 %s48, 1
      %s50 = scalar_select %p47, %s48, %s49
      %p53 = pneg %p47
      %p54 = scmp.eq.s32.totalorder %s15, 1
      %p55 = por %p53, %p54
      %p56 = scmp.ne.s32.totalorder %s48, %s51
      %p57 = scmp.eq.s32.totalorder %s15, 0
      %p58 = por %p56, %p57
      %p59 = scmp.ne.s32.totalorder %s48, %s51
      %p60 = scmp.eq.s32.totalorder %s20, 1
      %p61 = por %p59, %p60
      %p62 = scmp.ne.s32.totalorder %s51, %s52
      %p63 = scmp.eq.s32.totalorder %s20, 0
      %p64 = por %p62, %p63
      %p65 = scmp.ne.s32.totalorder %s51, %s52
      %p66 = scmp.eq.s32.totalorder %s21, 1
      %p67 = por %p65, %p66
      %p69 = scmp.ne.s32.totalorder %s52, %s68
      %p70 = scmp.eq.s32.totalorder %s21, 0
      %p71 = por %p69, %p70
      %s72 = ssub.s32 %s23, %s37
      %p73 = scmp.eq.s32.totalorder %s72, 0
      %s75 = sadd.s32 %s74, 1
      %s76 = scalar_select %p73, %s74, %s75
      %p79 = pneg %p73
      %p80 = scmp.eq.s32.totalorder %s15, 1
      %p81 = por %p79, %p80
      %p82 = scmp.ne.s32.totalorder %s74, %s77
      %p83 = scmp.eq.s32.totalorder %s15, 0
      %p84 = por %p82, %p83
      %p85 = scmp.ne.s32.totalorder %s74, %s77
      %p86 = scmp.eq.s32.totalorder %s20, 1
      %p87 = por %p85, %p86
      %p88 = scmp.ne.s32.totalorder %s77, %s78
      %p89 = scmp.eq.s32.totalorder %s20, 0
      %p90 = por %p88, %p89
      %p91 = scmp.ne.s32.totalorder %s77, %s78
      %p92 = scmp.eq.s32.totalorder %s21, 1
      %p93 = por %p91, %p92
      %p95 = scmp.ne.s32.totalorder %s78, %s94
      %p96 = scmp.eq.s32.totalorder %s21, 0
      %p97 = por %p95, %p96
      %s98 = ssub.s32 %s23, %s37
      %p99 = scmp.eq.s32.totalorder %s98, 0
      %s101 = sadd.s32 %s100, 1
      %s102 = scalar_select %p99, %s100, %s101
      %p105 = pneg %p99
      %p106 = scmp.eq.s32.totalorder %s15, 1
      %p107 = por %p105, %p106
      %p108 = scmp.ne.s32.totalorder %s100, %s103
      %p109 = scmp.eq.s32.totalorder %s15, 0
      %p110 = por %p108, %p109
      %p111 = scmp.ne.s32.totalorder %s100, %s103
      %p112 = scmp.eq.s32.totalorder %s20, 1
      %p113 = por %p111, %p112
      %p114 = scmp.ne.s32.totalorder %s103, %s104
      %p115 = scmp.eq.s32.totalorder %s20, 0
      %p116 = por %p114, %p115
      %p117 = scmp.ne.s32.totalorder %s103, %s104
      %p118 = scmp.eq.s32.totalorder %s21, 1
      %p119 = por %p117, %p118
      %p121 = scmp.ne.s32.totalorder %s104, %s120
      %p122 = scmp.eq.s32.totalorder %s21, 0
      %p123 = por %p121, %p122
      %s124 = ssub.s32 %s22, %s41
      %s125 = ssub.s32 %s23, %s37
      %s126 = sor.u32 %s124, %s125
      %s127 = ssub.s32 %s24, %s33
      %s128 = sor.u32 %s126, %s127
      %p129 = scmp.eq.s32.totalorder %s128, 0
      %s131 = sadd.s32 %s130, 1
      %s132 = scalar_select %p129, %s130, %s131
      %p135 = pneg %p129
      %p136 = scmp.eq.s32.totalorder %s15, 1
      %p137 = por %p135, %p136
      %p138 = scmp.ne.s32.totalorder %s130, %s133
      %p139 = scmp.eq.s32.totalorder %s15, 0
      %p140 = por %p138, %p139
      %p141 = scmp.ne.s32.totalorder %s130, %s133
      %p142 = scmp.eq.s32.totalorder %s20, 1
      %p143 = por %p141, %p142
      %p144 = scmp.ne.s32.totalorder %s133, %s134
      %p145 = scmp.eq.s32.totalorder %s20, 0
      %p146 = por %p144, %p145
      %p147 = scmp.ne.s32.totalorder %s133, %s134
      %p148 = scmp.eq.s32.totalorder %s21, 1
      %p149 = por %p147, %p148
      %p151 = scmp.ne.s32.totalorder %s134, %s150
      %p152 = scmp.eq.s32.totalorder %s21, 0
      %p153 = por %p151, %p152
      %p154 = scmp.le.s32.totalorder 1, %s15
      %p155 = scmp.lt.s32.totalorder %s15, 3
      %p156 = pnand %p154, %p155
      %p157 = pneg %p156
      // Predicated region
      $region9: #{tpu_custom_call.1} parent=5 // pred_check
        _
      $region10: #{tpu_custom_call.1} parent=5 // pred_check_branch
        %159 = sbr.rel (%p156) target = $region12
      $region11: #{tpu_custom_call.1} parent=5 // pred_region
        %s160 = ssub.s32 %s15, 1
        // Predicated region
        $region13: #{tpu_custom_call.1} parent=11 // pred_check
          %p161 = pneg %p90
        $region14: #{tpu_custom_call.1} parent=11 // pred_check_branch
          %163 = sbr.rel (%p161) target = $region16
        $region15: #{tpu_custom_call.1} parent=11 // pred_region
          %s164 = smul.u32 2, %s26
          %s165 = ssub.s32 1, %s164
          %s166 = smul.u32 64, %s165
          %p167 = scmp.lt.s32.totalorder %s164, 0
          %s168 = scalar_select %p167, %s164, 0
          %s169 = smul.addr %s168, 4
          %s170 = scalar_lea.vmem %s1, %s169
          %s171 = smul.u32 2, %s26
          %s172 = ssub.s32 1, %s171
          %s173 = smul.u32 64, %s172
        $region16: #{tpu_custom_call.1} parent=11 // pred_fallthru
          _
        // Predicated region
        $region17: #{tpu_custom_call.1} parent=11 // pred_check
          %p174 = pneg %p116
        $region18: #{tpu_custom_call.1} parent=11 // pred_check_branch
          %176 = sbr.rel (%p174) target = $region20
        $region19: #{tpu_custom_call.1} parent=11 // pred_region
          %s177 = smul.u32 2, %s26
          %s178 = ssub.s32 1, %s177
          %s179 = smul.u32 64, %s178
          %p180 = scmp.lt.s32.totalorder %s177, 0
          %s181 = scalar_select %p180, %s177, 0
          %s182 = smul.addr %s181, 4
          %s183 = scalar_lea.vmem %s2, %s182
          %s184 = smul.u32 2, %s26
          %s185 = ssub.s32 1, %s184
          %s186 = smul.u32 64, %s185
        $region20: #{tpu_custom_call.1} parent=11 // pred_fallthru
          _
      $region12: #{tpu_custom_call.1} parent=5 // pred_fallthru
        _
      %p187 = scmp.lt.s32.totalorder %s15, 2
      // Predicated region
      $region21: #{tpu_custom_call.1} parent=5 // pred_check
        %p188 = pneg %p187
      $region22: #{tpu_custom_call.1} parent=5 // pred_check_branch
        %190 = sbr.rel (%p188) target = $region24
      $region23: #{tpu_custom_call.1} parent=5 // pred_region
        // Predicated region
        $region25: #{tpu_custom_call.1} parent=23 // pred_check
          %p191 = pneg %p58
        $region26: #{tpu_custom_call.1} parent=23 // pred_check_branch
          %193 = sbr.rel (%p191) target = $region28
        $region27: #{tpu_custom_call.1} parent=23 // pred_region
          %s194 = sand.u32 %s48, 1
          %s195 = scalar_lea.sflag [#allocation3], %s194
          %s196 = sand.u32 %s48, 1
          %s197 = smul.addr %s196, 16
          %s198 = scalar_lea.vmem [#allocation2], %s197
          %s199 = smul.u32 2, %s23
          %s200 = smul.u32 2, %s24
          %s201 = ssub.s32 1, %s199
          %s202 = smul.u32 64, %s201
          %s203 = smul.u32 %s202, 2
          %s205 = ssub.s32 256, %s203
          %206 = vsyncadd %s195, %s205
          %p207 = scmp.ne.s32.totalorder 0, %s203
          %s208 = smul.addr %s199, 2
          %s209 = sadd.s32 %s200, %s208
          %s210 = smul.addr %s22, 2
          %s211 = sadd.s32 %s209, %s210
          %s212 = smul.addr %s211, 64
          %s213 = scalar_lea.hbm %s0, %s212
          %s214 = smul.u32 8, %s201
          %s215 = sshll.u32 %s198, 4
          %s216 = int_to_ptr.vmem [resolvable:$true] %s215
          %s217 = sshll.u32 %s214, 4
          %221 = dma.hbm_to_vmem [thread:$0]  (%p207), %s213, %s217, %s216, %s195, 128, 128, 8
        $region28: #{tpu_custom_call.1} parent=23 // pred_fallthru
          _
      $region24: #{tpu_custom_call.1} parent=5 // pred_fallthru
        _
      %p222 = scmp.le.s32.totalorder 1, %s15
      %p223 = scmp.lt.s32.totalorder %s15, 3
      %p224 = pnand %p222, %p223
      %p225 = pneg %p224
      // Predicated region
      $region29: #{tpu_custom_call.1} parent=5 // pred_check
        _
      $region30: #{tpu_custom_call.1} parent=5 // pred_check_branch
        %227 = sbr.rel (%p224) target = $region32
      $region31: #{tpu_custom_call.1} parent=5 // pred_region
        %s228 = ssub.s32 %s15, 1
        %s229 = sand.u32 %s51, 1
        %s230 = scalar_lea.sflag [#allocation3], %s229
        %s231 = sand.u32 %s51, 1
        %s232 = smul.addr %s231, 16
        %s233 = scalar_lea.vmem [#allocation2], %s232
        // Predicated region
        $region33: #{tpu_custom_call.1} parent=31 // pred_check
          %p234 = pneg %p64
        $region34: #{tpu_custom_call.1} parent=31 // pred_check_branch
          %236 = sbr.rel (%p234) target = $region36
        $region35: #{tpu_custom_call.1} parent=31 // pred_region
          %237 = dma.done %s230, 256
        $region36: #{tpu_custom_call.1} parent=31 // pred_fallthru
          _
        %s238 = sand.u32 %s51, 1
        %s239 = scalar_lea.sflag [#allocation3], %s238
        %s240 = sand.u32 %s51, 1
        %s241 = smul.addr %s240, 16
        %s242 = scalar_lea.vmem [#allocation2], %s241
        %p243 = pneg %p64
        %p244 = pneg %p61
        %s245 = smul.u32 2, %s26
        %s246 = ssub.s32 1, %s245
        %s247 = smul.u32 64, %s246
        %p248 = scmp.lt.s32.totalorder %s245, 0
        %s249 = scalar_select %p248, %s245, 0
        %s250 = smul.addr %s249, 4
        %s251 = scalar_lea.vmem %s1, %s250
        %p252 = pneg %p90
        %p253 = pneg %p87
        %s254 = smul.u32 2, %s26
        %s255 = ssub.s32 1, %s254
        %s256 = smul.u32 64, %s255
        %p257 = scmp.lt.s32.totalorder %s254, 0
        %s258 = scalar_select %p257, %s254, 0
        %s259 = smul.addr %s258, 4
        %s260 = scalar_lea.vmem %s2, %s259
        %p261 = pneg %p116
        %p262 = pneg %p113
        %p263 = pneg %p146
        %p264 = pneg %p143
        %s265 = sand.u32 %s133, 1
        %s266 = scalar_lea.sflag [#allocation4], %s265
        %s267 = sand.u32 %s133, 1
        %s268 = smul.addr %s267, 16
        %s269 = scalar_lea.vmem [#allocation5], %s268
        %s270 = smul.u32 2, %s26
        %s271 = smul.u32 2, %s27
        %s272 = ssub.s32 1, %s270
        %s273 = smul.u32 64, %s272
        %s274 = smul.u32 %s273, 2
        %s275 = smul.u32 2, %s26
        %s276 = ssub.s32 1, %s275
        %s277 = smul.u32 64, %s276
        %p278 = scmp.lt.s32.totalorder %s275, 0
        %s279 = scalar_select %p278, %s275, 0
        %s280 = smul.addr %s279, 4
        %s281 = scalar_lea.vmem %s1, %s280
        %s282 = smul.u32 2, %s26
        %s283 = ssub.s32 1, %s282
        %s284 = smul.u32 64, %s283
        %s285 = smul.u32 2, %s26
        %s286 = ssub.s32 1, %s285
        %s287 = smul.u32 64, %s286
        %p288 = scmp.lt.s32.totalorder %s285, 0
        %s289 = scalar_select %p288, %s285, 0
        %s290 = smul.addr %s289, 4
        %s291 = scalar_lea.vmem %s2, %s290
        %s292 = smul.u32 2, %s26
        %s293 = ssub.s32 1, %s292
        %s294 = smul.u32 64, %s293
        %s295 = smul.u32 2, %s26
        %s296 = smul.u32 2, %s27
        %s297 = ssub.s32 1, %s295
        %s298 = smul.u32 64, %s297
        %s299 = smul.u32 %s298, 2
        %v300 = vld [vmem:[%s233] sm:$0xff]
        %v301 = vld [vmem:[%s233 + $0x8] sm:$0xff]
        %v302 = vld [vmem:[%s281] sm:$0xff]
        %304 = vset.pattern.permute.xlu0 0
        %305 = vperm.xlu0 %304, %v302
        %v306 = vpop.permute.xlu0 %305
        %v308 = vunpack.c.l.s4 839922192
        %v309 = vunpack.c.0.s8 %v308
        %v310 = vlaneseq
        %v311 = vshrl.u32 %v310, 7
        %v312 = vsub.s32 %v309, %v311
        %v313 = vrot.slane %v306, %v312
        %v315 = vunpack.c.l.s4 1985246804
        %v316 = vunpack.c.0.s8 %v315
        %v317 = vlaneseq
        %v318 = vshrl.u32 %v317, 7
        %v319 = vsub.s32 %v316, %v318
        %v320 = vrot.slane %v306, %v319
        %v323 = vmul.f32 %v300, %v313
        %v324 = vmul.f32 %v301, %v320
        %v325 = vld [vmem:[%s291] sm:$0xff]
        %327 = vset.pattern.permute.xlu0 0
        %328 = vperm.xlu0 %327, %v325
        %v329 = vpop.permute.xlu0 %328
        %v331 = vunpack.c.l.s4 839922192
        %v332 = vunpack.c.0.s8 %v331
        %v333 = vlaneseq
        %v334 = vshrl.u32 %v333, 7
        %v335 = vsub.s32 %v332, %v334
        %v336 = vrot.slane %v329, %v335
        %v338 = vunpack.c.l.s4 1985246804
        %v339 = vunpack.c.0.s8 %v338
        %v340 = vlaneseq
        %v341 = vshrl.u32 %v340, 7
        %v342 = vsub.s32 %v339, %v341
        %v343 = vrot.slane %v329, %v342
        %v346 = vadd.f32 %v323, %v336
        %v347 = vadd.f32 %v324, %v343
        %348 = vst [vmem:[%s269] sm:$0xff] %v346
        %349 = vst [vmem:[%s269 + $0x8] sm:$0xff] %v347
        %s350 = sand.u32 %s133, 1
        %s351 = scalar_lea.sflag [#allocation4], %s350
        %s352 = sand.u32 %s133, 1
        %s353 = smul.addr %s352, 16
        %s354 = scalar_lea.vmem [#allocation5], %s353
        // Predicated region
        $region37: #{tpu_custom_call.1} parent=31 // pred_check
          %p355 = pneg %p143
        $region38: #{tpu_custom_call.1} parent=31 // pred_check_branch
          %357 = sbr.rel (%p355) target = $region40
        $region39: #{tpu_custom_call.1} parent=31 // pred_region
          %s358 = smul.u32 2, %s26
          %s359 = smul.u32 2, %s27
          %s360 = ssub.s32 1, %s358
          %s361 = smul.u32 64, %s360
          %s362 = smul.u32 %s361, 2
          %s364 = ssub.s32 256, %s362
          %365 = vsyncadd %s351, %s364
          %p366 = scmp.ne.s32.totalorder 0, %s362
          %s367 = smul.addr %s358, 2
          %s368 = sadd.s32 %s359, %s367
          %s369 = smul.addr %s25, 2
          %s370 = sadd.s32 %s368, %s369
          %s371 = smul.addr %s370, 64
          %s372 = scalar_lea.hbm %s3, %s371
          %s373 = smul.u32 8, %s360
          %s374 = sshll.u32 %s354, 4
          %s375 = int_to_ptr.vmem [resolvable:$true] %s374
          %s376 = sshll.u32 %s373, 4
          %380 = dma.vmem_to_hbm [thread:$0]  (%p366), %s375, %s376, %s372, %s351, 128, 128, 8
        $region40: #{tpu_custom_call.1} parent=31 // pred_fallthru
          _
      $region32: #{tpu_custom_call.1} parent=5 // pred_fallthru
        _
      %p381 = scmp.le.s32.totalorder 2, %s15
      // Predicated region
      $region41: #{tpu_custom_call.1} parent=5 // pred_check
        %p382 = pneg %p381
      $region42: #{tpu_custom_call.1} parent=5 // pred_check_branch
        %384 = sbr.rel (%p382) target = $region44
      $region43: #{tpu_custom_call.1} parent=5 // pred_region
        %s385 = ssub.s32 %s15, 2
        // Predicated region
        $region45: #{tpu_custom_call.1} parent=43 // pred_check
          %p386 = pneg %p149
        $region46: #{tpu_custom_call.1} parent=43 // pred_check_branch
          %388 = sbr.rel (%p386) target = $region48
        $region47: #{tpu_custom_call.1} parent=43 // pred_region
          %s389 = sand.u32 %s134, 1
          %s390 = scalar_lea.sflag [#allocation4], %s389
          %s391 = sand.u32 %s134, 1
          %s392 = smul.addr %s391, 16
          %s393 = scalar_lea.vmem [#allocation5], %s392
          %394 = dma.done %s390, 256
        $region48: #{tpu_custom_call.1} parent=43 // pred_fallthru
          _
      $region44: #{tpu_custom_call.1} parent=5 // pred_fallthru
        _
    $region6: #{tpu_custom_call.1} parent=1 // loop_footer
      %s19 = sadd.s32 1, %s15
    $region7: #{tpu_custom_call.1} parent=1 // loop_footer_branch
      %14 = sbr.rel target = $region3
    $region8: #{tpu_custom_call.1} parent=1 // loop_exit
      _
    %395 = vsyncpa [#allocation3], 1
    %s396 = scalar_lea.sflag [#allocation3], 1
    %397 = vsyncpa %s396, 1
    %398 = vsyncpa [#allocation4], 1
    %s399 = scalar_lea.sflag [#allocation4], 1
    %400 = vsyncpa %s399, 1

</llo_original>
